<compile_context>
chip_gen: v5e
topology: v5e:2x2
jax: 0.10.0
libtpu: 0.0.40
codegen_flags: <defaults>
</compile_context>

<pallas_src>
import math

import jax
import jax.numpy as jnp
from jax.experimental import pallas as pl
from jax.experimental.pallas import tpu as pltpu


def _ape_add_kernel(x_ref, pe_ref, o_ref):
    # x_ref: (bt, ct) tile of flattened embeddings; pe_ref: (1, ct) matching
    # tile of the positional-encoding row (batch broadcast handled by the VPU).
    o_ref[...] = (x_ref[...] + pe_ref[...]).astype(o_ref.dtype)


def make_sinusoidal_pe(max_len: int, embed_dim: int) -> jnp.ndarray:
    """Deterministic sinusoidal positional-encoding buffer, shape [max_len, D]."""
    position = jnp.arange(max_len, dtype=jnp.float32)[:, None]            # [L, 1]
    div_term = jnp.exp(
        jnp.arange(0, embed_dim, 2, dtype=jnp.float32)
        * -(math.log(10000.0) / embed_dim)
    )                                                                     # [D/2]
    angles = position * div_term[None, :]                                 # [L, D/2]
    pe = jnp.zeros((max_len, embed_dim), dtype=jnp.float32)
    pe = pe.at[:, 0::2].set(jnp.sin(angles))
    pe = pe.at[:, 1::2].set(jnp.cos(angles))
    return pe


def _choose_tiles(B: int, C: int, itemsize: int, max_tile_bytes: int):
    """Pick (bt, ct) for the flattened [B, C] add.

    bt is a multiple of the sublane packing (or equals B); ct is a multiple of
    128 (or equals C).  Prefers full-width tiles, else tall (bt up to 128)
    tiles so the (1, ct) pe tile is amortized over many rows.
    """
    sub = {4: 8, 2: 16, 1: 32}.get(itemsize, 8)

    # Whole array fits in one block.
    if B * C * itemsize <= max_tile_bytes:
        return B, C

    rows_fit = max_tile_bytes // (C * itemsize)
    if rows_fit >= sub:
        # Full-width tiles, as many sublane-aligned rows as fit the budget.
        bt = min(B, (rows_fit // sub) * sub)
        return bt, C

    # A full row is too wide: go tall (bias toward 64-128 rows) and narrow
    # (128-aligned ct) so pe traffic and broadcast work stay negligible.
    bt = B if B <= sub else max(sub, (min(B, 128) // sub) * sub)
    ct = (max_tile_bytes // (bt * itemsize)) // 128 * 128
    ct = max(128, min(ct, C))
    return bt, ct


def absolute_positional_encoding(x: jnp.ndarray, pe: jnp.ndarray, *,
                                 max_tile_bytes: int = 4 * 1024 * 1024,
                                 small_bypass_bytes: int = 256 * 1024,
                                 donate_x: bool = False) -> jnp.ndarray:
    """x: [B, S, D]; pe: [max_len, D] f32 buffer. Returns x + pe[:S] (eval-mode)."""
    B, S, D = x.shape
    C = S * D

    # Match PyTorch promotion: float32 buffer + low-precision x -> float32 out.
    out_dtype = jnp.result_type(x.dtype, pe.dtype)
    pe_slice = pe[:S, :]

    x_itemsize = jnp.dtype(x.dtype).itemsize
    out_itemsize = jnp.dtype(out_dtype).itemsize
    pe_itemsize = jnp.dtype(pe_slice.dtype).itemsize

    # Tiny-input bypass: kernel dispatch / grid setup dominates; a plain XLA
    # fused add is faster and simpler.
    if B * C * max(x_itemsize, out_itemsize) <= small_bypass_bytes:
        return (x + pe_slice[None, :, :]).astype(out_dtype)

    # Flatten (S, D) into the lane axis so stores are lane-dense for any D.
    x2 = x.reshape(B, C)
    pe_row = pe_slice.reshape(1, C)

    bt, ct = _choose_tiles(B, C, max(x_itemsize, out_itemsize), max_tile_bytes)
    nb, nc = pl.cdiv(B, bt), pl.cdiv(C, ct)

    # C-axis outer, batch-axis inner: pe's block index (0, j) is constant
    # across the inner axis, so each pe tile is DMA'd exactly once.
    grid = (nc, nb)

    # Double-buffered x tile + output tile + pe tile, with 2x headroom.
    vmem_need = (2 * bt * ct * x_itemsize
                 + 2 * bt * ct * out_itemsize
                 + 2 * ct * pe_itemsize)
    vmem_limit = int(min(48 * 1024 * 1024, max(32 * 1024 * 1024, 2 * vmem_need)))

    in_out_aliases = {}
    if donate_x and jnp.dtype(x.dtype) == jnp.dtype(out_dtype):
        in_out_aliases = {0: 0}   # reuse x's HBM buffer for the output

    out2 = pl.pallas_call(
        _ape_add_kernel,
        out_shape=jax.ShapeDtypeStruct((B, C), out_dtype),
        grid=grid,
        in_specs=[
            pl.BlockSpec((bt, ct), lambda j, i: (i, j)),   # x tile
            pl.BlockSpec((1, ct), lambda j, i: (0, j)),    # pe tile (batch bcast)
        ],
        out_specs=pl.BlockSpec((bt, ct), lambda j, i: (i, j)),
        compiler_params=pltpu.CompilerParams(
            dimension_semantics=("parallel", "parallel"),
            vmem_limit_bytes=vmem_limit,
        ),
        cost_estimate=pl.CostEstimate(
            flops=B * C,
            transcendentals=0,
            bytes_accessed=B * C * x_itemsize + B * C * out_itemsize + C * pe_itemsize,
        ),
        input_output_aliases=in_out_aliases,
    )(x2, pe_row)

    return out2.reshape(B, S, D)


if __name__ == "__main__":
    # Small, module-consistent shapes: batch=2, seq=8, embed_dim=32
    B, S, D = 2, 8, 32
    MAX_LEN = 64

    key = jax.random.PRNGKey(0)
    x = jax.random.normal(key, (B, S, D), dtype=jnp.float32)
    pe = make_sinusoidal_pe(MAX_LEN, D)

    # Force the Pallas path even at this tiny shape (bypass threshold = 0).
    out = absolute_positional_encoding(x, pe, small_bypass_bytes=0)
    out = jax.block_until_ready(out)

    ref = x + pe[None, :S, :]
    assert out.shape == (B, S, D)
    assert out.dtype == ref.dtype
    assert jnp.allclose(out, ref, atol=1e-6, rtol=1e-6)

    # Default path (tiny-input XLA bypass) must agree as well.
    out2 = jax.block_until_ready(absolute_positional_encoding(x, pe))
    assert jnp.allclose(out2, ref, atol=1e-6, rtol=1e-6)

    print("KERNEL_OK")
</pallas_src>

<mosaic_0001>
module attributes {stable_mosaic.version = 11 : i64} {
  func.func @_ape_add_kernel(%arg0: i32, %arg1: i32, %arg2: memref<2x256xf32, #tpu.memory_space<vmem>>, %arg3: memref<1x256xf32, #tpu.memory_space<vmem>>, %arg4: memref<2x256xf32, #tpu.memory_space<vmem>>) attributes {dimension_semantics = [#tpu.dimension_semantics<parallel>, #tpu.dimension_semantics<parallel>], iteration_bounds = array<i64: 1, 1>, scalar_prefetch = 0 : i64, scratch_operands = 0 : i64, tpu.core_type = #tpu.core_type<tc>, window_params = [{transform_indices = @transform_0, window_bounds = array<i64: 2, 256>}, {transform_indices = @transform_1, window_bounds = array<i64: 1, 256>}, {transform_indices = @transform_2, window_bounds = array<i64: 2, 256>}]} {
    %c0 = arith.constant 0 : index
    %c0_0 = arith.constant 0 : index
    %0 = vector.load %arg2[%c0, %c0_0] : memref<2x256xf32, #tpu.memory_space<vmem>>, vector<2x256xf32>
    %c0_1 = arith.constant 0 : index
    %c0_2 = arith.constant 0 : index
    %1 = vector.load %arg3[%c0_1, %c0_2] : memref<1x256xf32, #tpu.memory_space<vmem>>, vector<1x256xf32>
    %2 = vector.broadcast %1 : vector<1x256xf32> to vector<2x256xf32>
    %3 = arith.addf %0, %2 : vector<2x256xf32>
    %c0_3 = arith.constant 0 : index
    %c0_4 = arith.constant 0 : index
    %4 = vector.load %arg4[%c0_3, %c0_4] : memref<2x256xf32, #tpu.memory_space<vmem>>, vector<2x256xf32>
    tpu.vector_store %arg4[%c0_3, %c0_4], %3 {strides = array<i32>} : memref<2x256xf32, #tpu.memory_space<vmem>>, vector<2x256xf32>,
    return
  }
  func.func @transform_0(%arg0: i32, %arg1: i32) -> (i32, i32) {
    %c0_i32 = arith.constant 0 : i32
    return %arg1, %arg0 : i32, i32
  }
  func.func @transform_1(%arg0: i32, %arg1: i32) -> (i32, i32) {
    %c0_i32 = arith.constant 0 : i32
    %c0_i32_0 = arith.constant 0 : i32
    return %c0_i32, %arg0 : i32, i32
  }
  func.func @transform_2(%arg0: i32, %arg1: i32) -> (i32, i32) {
    %c0_i32 = arith.constant 0 : i32
    return %arg1, %arg0 : i32, i32
  }
}

</mosaic_0001>

<llo_original>
// kernel: tpu_custom_call.1
$region0: #{tpu_custom_call.1}
  #allocation0 [shape = 'u32[]', space=smem, size = 0x4, offset = 0x4, fixed_abs, tag = 'smem constant byte address 0x4 - core index']
  #allocation1 [shape = 'u32[72,128]{1,0:T(1,128)}', space=vmem, size = 0x9000, scoped, tag = 'internal scratch']
  %s0 = inlined_call_operand.hbm [shape: f32[2,256], index: 0, kind: input, shape index: {}]
  %s1 = inlined_call_operand.hbm [shape: f32[1,256], index: 1, kind: input, shape index: {}]
  %s2 = inlined_call_operand.hbm [shape: f32[2,256], index: 2, kind: output, shape index: {}]
  %s3 = sld [smem:[#allocation0]]
  $region26: #{tpu_custom_call.1} parent=0
    _
  %s5 = ssub.s32 1, %s3
  %s6 = scalar_select 0, %s5, %s3
  $region1: #{tpu_custom_call.1} parent=0
    #allocation2 [shape = 'u8[2048]{0}', space=vmem, size = 0x800, scoped, tag = 'input window, operand 0, single buffered']
    #allocation3 [shape = 's32[1]{0}', space=sflag, size = 0x4, scoped, tag = 'scoped memory for tpu_custom_call.1']
    #allocation4 [shape = 's32[1]{0}', space=sflag, size = 0x4, scoped, tag = 'scoped memory for tpu_custom_call.1']
    #allocation5 [shape = 'u8[1024]{0}', space=vmem, size = 0x400, scoped, tag = 'input window, operand 1, single buffered']
    #allocation6 [shape = 's32[1]{0}', space=sflag, size = 0x4, scoped, tag = 'scoped memory for tpu_custom_call.1']
    #allocation7 [shape = 'u8[2048]{0}', space=vmem, size = 0x800, scoped, tag = 'output window, operand 0, single buffered']
    %7 = vsyncpa [#allocation3], 0
    %8 = vsyncpa [#allocation6], 0
    %9 = vsyncpa [#allocation4], 0
    // Predicated region
    $region2: #{tpu_custom_call.1} parent=1 // pred_check
      _
    $region3: #{tpu_custom_call.1} parent=1 // pred_check_branch
      %11 = sbr.rel (0) target = $region5
    $region4: #{tpu_custom_call.1} parent=1 // pred_region
      %13 = vsyncadd [#allocation3], 0
      %s15 = sshll.u32 %s0, 4
      %s16 = int_to_ptr.hbm [resolvable:$true] %s15
      %s17 = sshll.u32 [#allocation2], 4
      %s18 = int_to_ptr.vmem [resolvable:$true] %s17
      %20 = dma.hbm_to_vmem [thread:$0]  %s16, 64, %s18, [#allocation3]
    $region5: #{tpu_custom_call.1} parent=1 // pred_fallthru
      _
    // Predicated region
    $region6: #{tpu_custom_call.1} parent=1 // pred_check
      _
    $region7: #{tpu_custom_call.1} parent=1 // pred_check_branch
      %22 = sbr.rel (0) target = $region9
    $region8: #{tpu_custom_call.1} parent=1 // pred_region
      %24 = vsyncadd [#allocation6], 0
      %s26 = sshll.u32 %s1, 4
      %s27 = int_to_ptr.hbm [resolvable:$true] %s26
      %s28 = sshll.u32 [#allocation5], 4
      %s29 = int_to_ptr.vmem [resolvable:$true] %s28
      %31 = dma.hbm_to_vmem [thread:$0]  %s27, 32, %s29, [#allocation6]
    $region9: #{tpu_custom_call.1} parent=1 // pred_fallthru
      _
    // Predicated region
    $region10: #{tpu_custom_call.1} parent=1 // pred_check
      _
    $region11: #{tpu_custom_call.1} parent=1 // pred_check_branch
      %33 = sbr.rel (0) target = $region13
    $region12: #{tpu_custom_call.1} parent=1 // pred_region
      %35 = dma.done [#allocation3], 64
    $region13: #{tpu_custom_call.1} parent=1 // pred_fallthru
      _
    // Predicated region
    $region14: #{tpu_custom_call.1} parent=1 // pred_check
      _
    $region15: #{tpu_custom_call.1} parent=1 // pred_check_branch
      %37 = sbr.rel (0) target = $region17
    $region16: #{tpu_custom_call.1} parent=1 // pred_region
      %39 = dma.done [#allocation6], 32
    $region17: #{tpu_custom_call.1} parent=1 // pred_fallthru
      _
    %v40 = vld [vmem:[#allocation2] sm:$0xf]
    %v41 = vld [vmem:[#allocation5] sm:$0x3]
    %v43 = vperm.slane %v41, 0
    %v44 = vperm.slane %v41, 1
    %v45 = vrot.slane %v44, 6
    %vm46 = vcmask 1041408
    %v47 = vsel %vm46, %v43, %v45
    %v49 = vadd.f32 %v40, %v47
    %50 = vst [vmem:[#allocation7] sm:$0xf] %v49
    // Predicated region
    $region18: #{tpu_custom_call.1} parent=1 // pred_check
      _
    $region19: #{tpu_custom_call.1} parent=1 // pred_check_branch
      %52 = sbr.rel (0) target = $region21
    $region20: #{tpu_custom_call.1} parent=1 // pred_region
      %54 = vsyncadd [#allocation4], 0
      %s56 = sshll.u32 [#allocation7], 4
      %s57 = int_to_ptr.vmem [resolvable:$true] %s56
      %s58 = sshll.u32 %s2, 4
      %s59 = int_to_ptr.hbm [resolvable:$true] %s58
      %61 = dma.vmem_to_hbm [thread:$0]  %s57, 64, %s59, [#allocation4]
    $region21: #{tpu_custom_call.1} parent=1 // pred_fallthru
      _
    // Predicated region
    $region22: #{tpu_custom_call.1} parent=1 // pred_check
      _
    $region23: #{tpu_custom_call.1} parent=1 // pred_check_branch
      %63 = sbr.rel (0) target = $region25
    $region24: #{tpu_custom_call.1} parent=1 // pred_region
      %65 = dma.done [#allocation4], 64
    $region25: #{tpu_custom_call.1} parent=1 // pred_fallthru
      _
    %66 = vsyncpa [#allocation3], 1
    %67 = vsyncpa [#allocation6], 1
    %68 = vsyncpa [#allocation4], 1

</llo_original>
